<compile_context>
chip_gen: v6e
topology: v6e:2x2x1
jax: 0.10.0
libtpu: 0.0.40
codegen_flags: <defaults>
</compile_context>

<pallas_src>
import math

import jax
import jax.numpy as jnp
from jax.experimental import pallas as pl
from jax.experimental.pallas import tpu as pltpu


def _decoder_y_kernel(uy_ref, asc_ref, w_ref, p_ref, o_ref):
    # uy_ref : (TBr, F)    VMEM tile of packed U_y (F = G * D_uy, lane dense)
    # asc_ref: (3, TBr, G) VMEM tile of stacked/reshaped A, S, C
    # w_ref  : (1, F) if G == 1 else (F, G) block-diagonal weight (resident)
    # p_ref  : (4,)        SMEM scalars [w_a, w_s, w_c, bias]
    # o_ref  : (TBr, G)    sigmoid(logits)
    uy = uy_ref[...].astype(jnp.float32)                      # (TBr, F)
    g = o_ref.shape[-1]                                       # static

    if g == 1:
        # N=1 matvec: VPU multiply + lane reduce, skip the MXU entirely.
        dot_uy = jnp.sum(uy * w_ref[...].astype(jnp.float32),
                         axis=-1, keepdims=True)              # (TBr, 1)
    else:
        # Packed layout: one MXU matmul against the (F, G) block-diagonal
        # weight does the segmented per-group lane reduction in one shot.
        dot_uy = jnp.dot(uy, w_ref[...].astype(jnp.float32),
                         preferred_element_type=jnp.float32)  # (TBr, G)

    asc = asc_ref[...].astype(jnp.float32)                    # (3, TBr, G)
    logits = (dot_uy
              + asc[0] * p_ref[0]
              + asc[1] * p_ref[1]
              + asc[2] * p_ref[2]
              + p_ref[3])
    o_ref[...] = jax.nn.sigmoid(logits).astype(o_ref.dtype)


def decoder_y_forward(U_y, A, S, C, weight, bias, *,
                      block_b=16384, min_pallas_batch=1024):
    """JAX/Pallas equivalent of DecoderY.forward.

    U_y    : (B, U_y_dim) float32/bfloat16
    A,S,C  : (B,) or (B, 1)
    weight : (1, U_y_dim + 3) float32  (PyTorch nn.Linear layout)
    bias   : (1,) float32
    returns: (B, 1) float32 probabilities
    """
    def as_vec(x):                                # inverse of torch check_dim
        return x.reshape(-1)

    A, S, C = as_vec(A), as_vec(S), as_vec(C)
    B, D_uy = U_y.shape

    w_flat = weight.reshape(-1).astype(jnp.float32)            # (D_uy + 3,)
    w_uy = w_flat[:D_uy]                                       # (D_uy,)
    w_a, w_s, w_c = w_flat[D_uy], w_flat[D_uy + 1], w_flat[D_uy + 2]
    b0 = bias.reshape(-1)[0].astype(jnp.float32)

    # Small-B fallback: the whole problem is a few KiB while a pallas_call
    # costs several µs of dispatch + pipeline warm-up; let XLA fuse it.
    # TODO(synk): in a real model this op should be fused into the U_y producer.
    if B < min_pallas_batch:
        logits = (U_y.astype(jnp.float32) @ w_uy.reshape(D_uy, 1)
                  + (A.astype(jnp.float32) * w_a
                     + S.astype(jnp.float32) * w_s
                     + C.astype(jnp.float32) * w_c + b0).reshape(B, 1))
        return jax.nn.sigmoid(logits)

    # Lane packing: fold G batch rows into one 128-lane row when possible.
    if D_uy < 128 and 128 % D_uy == 0 and B % (128 // D_uy) == 0:
        G = 128 // D_uy
    else:
        G = 1
    F = G * D_uy
    R = B // G

    uy2 = U_y.reshape(R, F)                       # free (contiguous row-major)
    asc = jnp.stack([A, S, C]).reshape(3, R, G)   # one DMA stream instead of 3

    if G == 1:
        w_in = w_uy.reshape(1, F)
    else:
        # (F, G) block-diagonal: column g holds w_uy in rows [g*D_uy,(g+1)*D_uy)
        w_in = jnp.kron(jnp.eye(G, dtype=jnp.float32), w_uy.reshape(D_uy, 1))

    params = jnp.stack([w_a, w_s, w_c, b0])       # (4,) -> SMEM

    # Tile rows: big enough to amortize ~0.35 µs/step against HBM DMA
    # (~1-2 MiB per step at default block_b), capped at 8192 rows so the
    # double-buffered VMEM footprint (padded to 128 lanes) stays <= ~8 MiB,
    # well inside every generation's scoped-VMEM default (incl. v7x).
    target_rows = max(8, min(block_b // G, 8192))
    if R <= target_rows:
        tbr = R                                   # single full-array block
    else:
        half = -(-R // 2)                         # >= 2 grid steps (v7x 2 TCs)
        half = -(-half // 8) * 8
        tbr = max(8, min(target_rows, half))
    grid = (pl.cdiv(R, tbr),)

    cost = pl.CostEstimate(
        flops=2 * B * D_uy + 8 * B,
        transcendentals=2 * B,                    # exp + reciprocal per sigmoid
        bytes_accessed=U_y.dtype.itemsize * B * D_uy
        + asc.dtype.itemsize * 3 * B + 4 * B + 4 * (F * G + 4),
    )

    out = pl.pallas_call(
        _decoder_y_kernel,
        out_shape=jax.ShapeDtypeStruct((R, G), jnp.float32),
        grid_spec=pltpu.PrefetchScalarGridSpec(
            num_scalar_prefetch=0,
            grid=grid,
            in_specs=[
                pl.BlockSpec((tbr, F), lambda i: (i, 0)),        # packed U_y
                pl.BlockSpec((3, tbr, G), lambda i: (0, i, 0)),  # A/S/C stack
                pl.BlockSpec(w_in.shape, lambda i: (0, 0)),      # weight (resident)
                pl.BlockSpec(memory_space=pltpu.MemorySpace.SMEM),  # scalars
            ],
            out_specs=pl.BlockSpec((tbr, G), lambda i: (i, 0)),
        ),
        compiler_params=pltpu.CompilerParams(
            dimension_semantics=("parallel",)),
        cost_estimate=cost,
    )(uy2, asc, w_in, params)

    return out.reshape(B, 1)


if __name__ == "__main__":
    def reference(U_y, A, S, C, weight, bias):
        x = jnp.concatenate(
            [U_y, A.reshape(-1, 1), S.reshape(-1, 1), C.reshape(-1, 1)], axis=1)
        return jax.nn.sigmoid(x @ weight.T + bias)

    U_Y_DIM = 32
    D = U_Y_DIM + 3

    # Deterministic nn.Linear-style init: U(-1/sqrt(fan_in), 1/sqrt(fan_in)).
    key = jax.random.PRNGKey(0)
    k_uy, k_a, k_s, k_c, k_w, k_b = jax.random.split(key, 6)
    bound = 1.0 / math.sqrt(D)
    weight = jax.random.uniform(k_w, (1, D), minval=-bound, maxval=bound,
                                dtype=jnp.float32)
    bias = jax.random.uniform(k_b, (1,), minval=-bound, maxval=bound,
                              dtype=jnp.float32)

    # Case 1: module-sized inputs (B=8). Force the Pallas packed path (G=4).
    B = 8
    U_y = jax.random.normal(k_uy, (B, U_Y_DIM), dtype=jnp.float32)
    A = jax.random.normal(k_a, (B,), dtype=jnp.float32)
    S = jax.random.normal(k_s, (B,), dtype=jnp.float32)
    C = jax.random.normal(k_c, (B,), dtype=jnp.float32)

    probs = decoder_y_forward(U_y, A, S, C, weight, bias, min_pallas_batch=0)
    jax.block_until_ready(probs)
    ref = reference(U_y, A, S, C, weight, bias)
    assert probs.shape == (B, 1)
    assert jnp.allclose(probs, ref, atol=1e-6), "mismatch vs reference (small)"

    # Case 2: tiled packed path (grid > 1, incl. a partial last block).
    B2 = 1280
    k2 = jax.random.split(jax.random.PRNGKey(1), 4)
    U_y2 = jax.random.normal(k2[0], (B2, U_Y_DIM), dtype=jnp.float32)
    A2 = jax.random.normal(k2[1], (B2,), dtype=jnp.float32)
    S2 = jax.random.normal(k2[2], (B2,), dtype=jnp.float32)
    C2 = jax.random.normal(k2[3], (B2,), dtype=jnp.float32)

    probs2 = decoder_y_forward(U_y2, A2, S2, C2, weight, bias,
                               block_b=512, min_pallas_batch=0)
    jax.block_until_ready(probs2)
    ref2 = reference(U_y2, A2, S2, C2, weight, bias)
    assert probs2.shape == (B2, 1)
    assert jnp.allclose(probs2, ref2, atol=1e-6), "mismatch vs reference (tiled)"

    # Case 3: batch not a multiple of 4 -> un-packed (G=1) Pallas path.
    B3 = 10
    k3 = jax.random.split(jax.random.PRNGKey(2), 4)
    U_y3 = jax.random.normal(k3[0], (B3, U_Y_DIM), dtype=jnp.float32)
    A3 = jax.random.normal(k3[1], (B3,), dtype=jnp.float32)
    S3 = jax.random.normal(k3[2], (B3,), dtype=jnp.float32)
    C3 = jax.random.normal(k3[3], (B3,), dtype=jnp.float32)

    probs3 = decoder_y_forward(U_y3, A3, S3, C3, weight, bias, min_pallas_batch=0)
    jax.block_until_ready(probs3)
    ref3 = reference(U_y3, A3, S3, C3, weight, bias)
    assert probs3.shape == (B3, 1)
    assert jnp.allclose(probs3, ref3, atol=1e-6), "mismatch vs reference (G=1)"

    # Case 4: default small-B XLA fallback path.
    probs4 = decoder_y_forward(U_y, A, S, C, weight, bias)
    jax.block_until_ready(probs4)
    assert jnp.allclose(probs4, ref, atol=1e-6), "mismatch vs reference (fallback)"

    print("KERNEL_OK")
</pallas_src>

<mosaic_0001>
module attributes {stable_mosaic.version = 11 : i64} {
  func.func @_decoder_y_kernel(%arg0: i32, %arg1: memref<2x128xf32, #tpu.memory_space<vmem>>, %arg2: memref<3x2x4xf32, #tpu.memory_space<vmem>>, %arg3: memref<128x4xf32, #tpu.memory_space<vmem>>, %arg4: memref<4xf32, #tpu.memory_space<smem>>, %arg5: memref<2x4xf32, #tpu.memory_space<vmem>>) attributes {dimension_semantics = [#tpu.dimension_semantics<parallel>], iteration_bounds = array<i64: 1>, scalar_prefetch = 0 : i64, scratch_operands = 0 : i64, tpu.core_type = #tpu.core_type<tc>, window_params = [{transform_indices = @transform_0, window_bounds = array<i64: 2, 128>}, {transform_indices = @transform_1, window_bounds = array<i64: 3, 2, 4>}, {pipeline_mode = #tpu.pipeline_mode<synchronous>, transform_indices = @transform_2, window_bounds = array<i64: 128, 4>}, {transform_indices = @transform_3, window_bounds = array<i64: 4>}, {transform_indices = @transform_4, window_bounds = array<i64: 2, 4>}]} {
    %c0 = arith.constant 0 : index
    %c0_0 = arith.constant 0 : index
    %0 = vector.load %arg1[%c0, %c0_0] : memref<2x128xf32, #tpu.memory_space<vmem>>, vector<2x128xf32>
    %c0_1 = arith.constant 0 : index
    %c0_2 = arith.constant 0 : index
    %1 = vector.load %arg3[%c0_1, %c0_2] : memref<128x4xf32, #tpu.memory_space<vmem>>, vector<128x4xf32>
    %cst = arith.constant dense<0.000000e+00> : vector<2x4xf32>
    %2 = tpu.matmul %0, %1, %cst {dimension_numbers = #tpu.dot_dimension_numbers<[1], [0], [0], [1], [0, 0, 1, 1], [], []>} : vector<2x128xf32>, vector<128x4xf32>, vector<2x4xf32> -> vector<2x4xf32>
    %c0_3 = arith.constant 0 : index
    %c0_4 = arith.constant 0 : index
    %c0_5 = arith.constant 0 : index
    %3 = vector.load %arg2[%c0_3, %c0_4, %c0_5] : memref<3x2x4xf32, #tpu.memory_space<vmem>>, vector<3x2x4xf32>
    %4 = vector.extract_strided_slice %3 {offsets = [0, 0, 0], sizes = [1, 2, 4], strides = [1, 1, 1]} : vector<3x2x4xf32> to vector<1x2x4xf32>
    %5 = vector.shape_cast %4 : vector<1x2x4xf32> to vector<2x4xf32>
    %c0_6 = arith.constant 0 : index
    %6 = memref.load %arg4[%c0_6] : memref<4xf32, #tpu.memory_space<smem>>
    %7 = vector.broadcast %6 : f32 to vector<2x4xf32>
    %8 = arith.mulf %5, %7 : vector<2x4xf32>
    %9 = arith.addf %2, %8 : vector<2x4xf32>
    %10 = vector.extract_strided_slice %3 {offsets = [1, 0, 0], sizes = [1, 2, 4], strides = [1, 1, 1]} : vector<3x2x4xf32> to vector<1x2x4xf32>
    %11 = vector.shape_cast %10 : vector<1x2x4xf32> to vector<2x4xf32>
    %c1 = arith.constant 1 : index
    %12 = memref.load %arg4[%c1] : memref<4xf32, #tpu.memory_space<smem>>
    %13 = vector.broadcast %12 : f32 to vector<2x4xf32>
    %14 = arith.mulf %11, %13 : vector<2x4xf32>
    %15 = arith.addf %9, %14 : vector<2x4xf32>
    %16 = vector.extract_strided_slice %3 {offsets = [2, 0, 0], sizes = [1, 2, 4], strides = [1, 1, 1]} : vector<3x2x4xf32> to vector<1x2x4xf32>
    %17 = vector.shape_cast %16 : vector<1x2x4xf32> to vector<2x4xf32>
    %c2 = arith.constant 2 : index
    %18 = memref.load %arg4[%c2] : memref<4xf32, #tpu.memory_space<smem>>
    %19 = vector.broadcast %18 : f32 to vector<2x4xf32>
    %20 = arith.mulf %17, %19 : vector<2x4xf32>
    %21 = arith.addf %15, %20 : vector<2x4xf32>
    %c3 = arith.constant 3 : index
    %22 = memref.load %arg4[%c3] : memref<4xf32, #tpu.memory_space<smem>>
    %23 = vector.broadcast %22 : f32 to vector<2x4xf32>
    %24 = arith.addf %21, %23 : vector<2x4xf32>
    %25 = arith.negf %24 : vector<2x4xf32>
    %26 = math.exp %25 : vector<2x4xf32>
    %cst_7 = arith.constant 1.000000e+00 : f32
    %27 = vector.broadcast %cst_7 : f32 to vector<2x4xf32>
    %28 = arith.addf %27, %26 : vector<2x4xf32>
    %29 = arith.divf %27, %28 : vector<2x4xf32>
    %c0_8 = arith.constant 0 : index
    %c0_9 = arith.constant 0 : index
    %30 = vector.load %arg5[%c0_8, %c0_9] : memref<2x4xf32, #tpu.memory_space<vmem>>, vector<2x4xf32>
    tpu.vector_store %arg5[%c0_8, %c0_9], %29 {strides = array<i32>} : memref<2x4xf32, #tpu.memory_space<vmem>>, vector<2x4xf32>,
    return
  }
  func.func @transform_0(%arg0: i32) -> (i32, i32) {
    %c0_i32 = arith.constant 0 : i32
    %c0_i32_0 = arith.constant 0 : i32
    return %arg0, %c0_i32 : i32, i32
  }
  func.func @transform_1(%arg0: i32) -> (i32, i32, i32) {
    %c0_i32 = arith.constant 0 : i32
    %c0_i32_0 = arith.constant 0 : i32
    %c0_i32_1 = arith.constant 0 : i32
    return %c0_i32, %arg0, %c0_i32_0 : i32, i32, i32
  }
  func.func @transform_2(%arg0: i32) -> (i32, i32) {
    %c0_i32 = arith.constant 0 : i32
    %c0_i32_0 = arith.constant 0 : i32
    %c0_i32_1 = arith.constant 0 : i32
    return %c0_i32, %c0_i32_0 : i32, i32
  }
  func.func @transform_3(%arg0: i32) -> i32 {
    %c0_i32 = arith.constant 0 : i32
    %c0_i32_0 = arith.constant 0 : i32
    return %c0_i32 : i32
  }
  func.func @transform_4(%arg0: i32) -> (i32, i32) {
    %c0_i32 = arith.constant 0 : i32
    %c0_i32_0 = arith.constant 0 : i32
    return %arg0, %c0_i32 : i32, i32
  }
}

</mosaic_0001>

<llo_original>
// kernel: tpu_custom_call.1
$region0: #{tpu_custom_call.1}
  #allocation0 [shape = 'u32[]', space=smem, size = 0x4, offset = 0x4, fixed_abs, tag = 'smem constant byte address 0x4 - core index']
  #allocation1 [shape = 'u32[144,128]{1,0:T(1,128)}', space=vmem, size = 0x12000, scoped, tag = 'internal scratch']
  %s0 = inlined_call_operand.vmem [shape: f32[2,128], index: 0, kind: input, shape index: {}]
  %s1 = inlined_call_operand.vmem [shape: f32[3,2,4], index: 1, kind: input, shape index: {}]
  %s2 = inlined_call_operand.vmem [shape: f32[128,4], index: 2, kind: input, shape index: {}]
  %s3 = inlined_call_operand.vmem [shape: f32[4], index: 3, kind: input, shape index: {}]
  %s4 = inlined_call_operand.hbm [shape: f32[2,4], index: 4, kind: output, shape index: {}]
  %s5 = sld [smem:[#allocation0]]
  $region30: #{tpu_custom_call.1} parent=0
    _
  %s7 = ssub.s32 1, %s5
  %s8 = scalar_select 0, %s7, %s5
  $region1: #{tpu_custom_call.1} parent=0
    #allocation2 [shape = 'u8[512]{0}', space=smem, size = 0x200, scoped, tag = 'input window, operand 3, single buffered']
    #allocation3 [shape = 's32[1]{0}', space=sflag, size = 0x4, scoped, tag = 'scoped memory for tpu_custom_call.1']
    #allocation4 [shape = 's32[1]{0}', space=sflag, size = 0x4, scoped, tag = 'scoped memory for tpu_custom_call.1']
    #allocation5 [shape = 'u8[1024]{0}', space=vmem, size = 0x400, scoped, tag = 'output window, operand 0, single buffered']
    %9 = vsyncpa [#allocation4], 0
    %10 = vsyncpa [#allocation3], 0
    // Predicated region
    $region2: #{tpu_custom_call.1} parent=1 // pred_check
      _
    $region3: #{tpu_custom_call.1} parent=1 // pred_check_branch
      %12 = sbr.rel (0) target = $region5
    $region4: #{tpu_custom_call.1} parent=1 // pred_region
      _
    $region5: #{tpu_custom_call.1} parent=1 // pred_fallthru
      _
    // Predicated region
    $region6: #{tpu_custom_call.1} parent=1 // pred_check
      _
    $region7: #{tpu_custom_call.1} parent=1 // pred_check_branch
      %14 = sbr.rel (0) target = $region9
    $region8: #{tpu_custom_call.1} parent=1 // pred_region
      _
    $region9: #{tpu_custom_call.1} parent=1 // pred_fallthru
      _
    // Predicated region
    $region10: #{tpu_custom_call.1} parent=1 // pred_check
      _
    $region11: #{tpu_custom_call.1} parent=1 // pred_check_branch
      %16 = sbr.rel (0) target = $region13
    $region12: #{tpu_custom_call.1} parent=1 // pred_region
      _
    $region13: #{tpu_custom_call.1} parent=1 // pred_fallthru
      _
    // Predicated region
    $region14: #{tpu_custom_call.1} parent=1 // pred_check
      _
    $region15: #{tpu_custom_call.1} parent=1 // pred_check_branch
      %18 = sbr.rel (0) target = $region17
    $region16: #{tpu_custom_call.1} parent=1 // pred_region
      %s20 = ssub.s32 16, 16
      %21 = vsyncadd [#allocation4], %s20
      %s23 = sshll.u32 %s3, 4
      %s24 = int_to_ptr.vmem [resolvable:$true] %s23
      %26 = dma.vmem_to_smem %s24, 16, [#allocation2], [#allocation4]
    $region17: #{tpu_custom_call.1} parent=1 // pred_fallthru
      _
    // Predicated region
    $region18: #{tpu_custom_call.1} parent=1 // pred_check
      _
    $region19: #{tpu_custom_call.1} parent=1 // pred_check_branch
      %28 = sbr.rel (0) target = $region21
    $region20: #{tpu_custom_call.1} parent=1 // pred_region
      %29 = dma.done [#allocation4], 16
    $region21: #{tpu_custom_call.1} parent=1 // pred_fallthru
      _
    %30 = sfence
    %v31 = vld [vmem:[%s0] sm:$0x3]
    %v32 = vld [vmem:[%s2] sm:$0xff]
    %v33 = vld [vmem:[%s2 + $0x8] sm:$0xff]
    %v34 = vld [vmem:[%s2 + $0x10] sm:$0xff]
    %v35 = vld [vmem:[%s2 + $0x18] sm:$0xff]
    %v36 = vld [vmem:[%s2 + $0x20] sm:$0xff]
    %v37 = vld [vmem:[%s2 + $0x28] sm:$0xff]
    %v38 = vld [vmem:[%s2 + $0x30] sm:$0xff]
    %v39 = vld [vmem:[%s2 + $0x38] sm:$0xff]
    %v40 = vld [vmem:[%s2 + $0x40] sm:$0xff]
    %v41 = vld [vmem:[%s2 + $0x48] sm:$0xff]
    %v42 = vld [vmem:[%s2 + $0x50] sm:$0xff]
    %v43 = vld [vmem:[%s2 + $0x58] sm:$0xff]
    %v44 = vld [vmem:[%s2 + $0x60] sm:$0xff]
    %v45 = vld [vmem:[%s2 + $0x68] sm:$0xff]
    %v46 = vld [vmem:[%s2 + $0x70] sm:$0xff]
    %v47 = vld [vmem:[%s2 + $0x78] sm:$0xff]
    %v48 = vld [vmem:[%s1] sm:$0x3]
    %v49 = vld [vmem:[%s1 + $0x2] sm:$0x3]
    %v50 = vld [vmem:[%s1 + $0x4] sm:$0x3]
    %s51 = sld [smem:[#allocation2]]
    %v52 = vstv %s51
    %v53 = vmul.f32 %v48, %v52
    %54 = vmatprep.subr.mxu0 0.0
    %55 = vmatpush1.msra.mxu0 %v47
    %56 = vmatprep.subr.mxu0 0.0
    %57 = vmatpush1.msra.mxu0 %v46
    %58 = vmatprep.subr.mxu0 0.0
    %59 = vmatpush1.msra.mxu0 %v45
    %60 = vmatprep.subr.mxu0 0.0
    %61 = vmatpush1.msra.mxu0 %v44
    %62 = vmatprep.subr.mxu0 0.0
    %63 = vmatpush1.msra.mxu0 %v43
    %64 = vmatprep.subr.mxu0 0.0
    %65 = vmatpush1.msra.mxu0 %v42
    %66 = vmatprep.subr.mxu0 0.0
    %67 = vmatpush1.msra.mxu0 %v41
    %68 = vmatprep.subr.mxu0 0.0
    %69 = vmatpush1.msra.mxu0 %v40
    %70 = vmatprep.subr.mxu0 0.0
    %71 = vmatpush1.msra.mxu0 %v39
    %72 = vmatprep.subr.mxu0 0.0
    %73 = vmatpush1.msra.mxu0 %v38
    %74 = vmatprep.subr.mxu0 0.0
    %75 = vmatpush1.msra.mxu0 %v37
    %76 = vmatprep.subr.mxu0 0.0
    %77 = vmatpush1.msra.mxu0 %v36
    %78 = vmatprep.subr.mxu0 0.0
    %79 = vmatpush1.msra.mxu0 %v35
    %80 = vmatprep.subr.mxu0 0.0
    %81 = vmatpush1.msra.mxu0 %v34
    %82 = vmatprep.subr.mxu0 0.0
    %83 = vmatpush1.msra.mxu0 %v33
    %84 = vmatprep.subr.mxu0 0.0
    %85 = vmatpush1.msra.mxu0 %v32
    %86 = vmatprep.subr.mxu0 0.0
    %87 = vmatpush2.msra.mxu0 0.0
    %88 = vmatprep.subr.mxu0 0.0
    %89 = vmatpush2.msra.mxu0 0.0
    %90 = vmatprep.subr.mxu0 0.0
    %91 = vmatpush2.msra.mxu0 0.0
    %92 = vmatprep.subr.mxu0 0.0
    %93 = vmatpush2.msra.mxu0 0.0
    %94 = vmatprep.subr.mxu0 0.0
    %95 = vmatpush2.msra.mxu0 0.0
    %96 = vmatprep.subr.mxu0 0.0
    %97 = vmatpush2.msra.mxu0 0.0
    %98 = vmatprep.subr.mxu0 0.0
    %99 = vmatpush2.msra.mxu0 0.0
    %100 = vmatprep.subr.mxu0 0.0
    %101 = vmatpush2.msra.mxu0 0.0
    %102 = vmatprep.subr.mxu0 0.0
    %103 = vmatpush2.msra.mxu0 0.0
    %104 = vmatprep.subr.mxu0 0.0
    %105 = vmatpush2.msra.mxu0 0.0
    %106 = vmatprep.subr.mxu0 0.0
    %107 = vmatpush2.msra.mxu0 0.0
    %108 = vmatprep.subr.mxu0 0.0
    %109 = vmatpush2.msra.mxu0 0.0
    %110 = vmatprep.subr.mxu0 0.0
    %111 = vmatpush2.msra.mxu0 0.0
    %112 = vmatprep.subr.mxu0 0.0
    %113 = vmatpush2.msra.mxu0 0.0
    %114 = vmatprep.subr.mxu0 0.0
    %115 = vmatpush2.msra.mxu0 0.0
    %116 = vmatprep.subr.mxu0 0.0
    %117 = vmatpush2.msra.mxu0 0.0
    %118 = vmatprep.mubr.f32.mxu0 0.0
    %119 = vmatmul.mubr.f32.gmra.mxu0 %v31
    %v120 = vpop.f32.mrf.mxu0
    %v121 = vadd.f32 %v53, %v120
    %v122 = vpop.f32.mrf.mxu0
    %123 = vdwg.mxu0
    %s124 = sld [smem:[#allocation2 + $0x1]]
    %v125 = vstv %s124
    %v126 = vmul.f32 %v49, %v125
    %v127 = vadd.f32 %v121, %v126
    %s128 = sld [smem:[#allocation2 + $0x2]]
    %v129 = vstv %s128
    %v130 = vmul.f32 %v50, %v129
    %v131 = vadd.f32 %v127, %v130
    %s132 = sld [smem:[#allocation2 + $0x3]]
    %v133 = vstv %s132
    %v134 = vadd.f32 %v131, %v133
    %v135 = vxor.u32 %v134, 2147483648
    %v136 = vmul.f32 %v135, 1.442695
    %v137 = vpow.pop %v136
    %v138 = vadd.f32 %v137, 1.0
    %v139 = vrcp.pop %v138
    %v140 = vmul.f32 1.0, %v139
    %vm141 = vcmask 25600
    %142 = vst.msk [vmem:[#allocation5] sm:$0x3] %vm141, %v140
    // Predicated region
    $region22: #{tpu_custom_call.1} parent=1 // pred_check
      _
    $region23: #{tpu_custom_call.1} parent=1 // pred_check_branch
      %144 = sbr.rel (0) target = $region25
    $region24: #{tpu_custom_call.1} parent=1 // pred_region
      %s146 = ssub.s32 32, 32
      %147 = vsyncadd [#allocation3], %s146
      %s149 = sshll.u32 [#allocation5], 4
      %s150 = int_to_ptr.vmem [resolvable:$true] %s149
      %152 = dma.vmem_to_hbm [thread:$0]  %s150, 32, %s4, [#allocation3]
    $region25: #{tpu_custom_call.1} parent=1 // pred_fallthru
      _
    // Predicated region
    $region26: #{tpu_custom_call.1} parent=1 // pred_check
      _
    $region27: #{tpu_custom_call.1} parent=1 // pred_check_branch
      %154 = sbr.rel (0) target = $region29
    $region28: #{tpu_custom_call.1} parent=1 // pred_region
      %155 = dma.done [#allocation3], 32
    $region29: #{tpu_custom_call.1} parent=1 // pred_fallthru
      _
    %156 = vsyncpa [#allocation3], 1
    %157 = vsyncpa [#allocation4], 1

</llo_original>
